<compile_context>
chip_gen: v6e
topology: v6e:2x2x1
jax: 0.10.0
libtpu: 0.0.40
codegen_flags: <defaults>
</compile_context>

<pallas_src>
import functools

import jax
import jax.numpy as jnp
from jax.experimental import pallas as pl
from jax.experimental.pallas import tpu as pltpu


def _hard_sigmoid(x):
    # (1 + hardtanh(2x - 1)) * 0.5  -- identical to the PyTorch reference
    return (1.0 + jnp.clip(2.0 * x - 1.0, -1.0, 1.0)) * 0.5


def actor_kernel(x_ref, p1_ref, p2_ref, out_ref):
    x = x_ref[...]                       # [tb, in]
    p1 = p1_ref[...]                     # [in+1, hidden]  (last row = b1)
    p2 = p2_ref[...]                     # [hidden+1, out] (last row = b2)

    in_f = x.shape[1]
    hidden = p1.shape[1]
    n_out = p2.shape[1]

    # l1: x @ W1 + b1
    w1 = p1[:in_f, :]
    b1 = p1[in_f:in_f + 1, :]
    x_temp = jnp.dot(x, w1, preferred_element_type=jnp.float32) + b1

    # hard_sigmoid
    x1 = _hard_sigmoid(x_temp)

    # l2: x1 @ W2 + b2
    w2 = p2[:hidden, :]
    b2 = p2[hidden:hidden + 1, :]
    x_1_temp = jnp.dot(x1, w2, preferred_element_type=jnp.float32) + b2

    # softmax over last dim (F.softmax default for 2-D input -> dim=1)
    m = jnp.max(x_1_temp, axis=-1, keepdims=True)
    e = jnp.exp(x_1_temp - m)
    x2 = e * pl.reciprocal(jnp.sum(e, axis=-1, keepdims=True), approx=True)

    # Pack everything into one lane-dense slab: single writeback.
    total = n_out + hidden + hidden + n_out
    pieces = [x2, x1, x_temp, x_1_temp]
    pad = out_ref.shape[1] - total
    if pad > 0:
        pieces.append(jnp.zeros((x.shape[0], pad), jnp.float32))
    out_ref[...] = jnp.concatenate(pieces, axis=-1)


def prepare_actor_params(w1, b1, w2, b2):
    """One-time parameter packing (hoisted out of the per-call path).

    w1: [hidden, in], b1: [hidden], w2: [out, hidden], b2: [out]
    Returns p1: [in+1, hidden], p2: [hidden+1, out].
    """
    p1 = jnp.concatenate([w1.T, b1.reshape(1, -1)], axis=0).astype(jnp.float32)
    p2 = jnp.concatenate([w2.T, b2.reshape(1, -1)], axis=0).astype(jnp.float32)
    return p1, p2


@functools.partial(jax.jit, static_argnames=("block_b",))
def actor_forward(x, p1, p2, *, block_b=512):
    """x: [B, in]; p1: [in+1, hidden]; p2: [hidden+1, out].

    Returns (x2, x1, x_temp, x_1_temp), matching Actor.forward.
    """
    B, in_f = x.shape
    hidden = p1.shape[1]
    n_out = p2.shape[1]

    total = n_out + hidden + hidden + n_out
    packed_w = ((total + 127) // 128) * 128   # lane-dense output width

    # Batch tiling: single full block for small B; 8-aligned tiles + parallel
    # grid (sharded across TensorCores on v7x) for large B.
    if B <= block_b:
        tile_b = B
    else:
        tile_b = block_b  # multiple of 8
    grid = (pl.cdiv(B, tile_b),)

    packed = pl.pallas_call(
        actor_kernel,
        out_shape=jax.ShapeDtypeStruct((B, packed_w), jnp.float32),
        grid=grid,
        in_specs=[
            pl.BlockSpec((tile_b, in_f), lambda i: (i, 0)),
            pl.BlockSpec((in_f + 1, hidden), lambda i: (0, 0)),   # resident
            pl.BlockSpec((hidden + 1, n_out), lambda i: (0, 0)),  # resident
        ],
        out_specs=pl.BlockSpec((tile_b, packed_w), lambda i: (i, 0)),
        compiler_params=pltpu.CompilerParams(
            dimension_semantics=("parallel",)),
    )(x, p1, p2)

    # Unpack (cheap XLA slices on the single lane-dense slab).
    x2 = packed[:, :n_out]
    x1 = packed[:, n_out:n_out + hidden]
    x_temp = packed[:, n_out + hidden:n_out + 2 * hidden]
    x_1_temp = packed[:, n_out + 2 * hidden:total]
    return x2, x1, x_temp, x_1_temp


def reference_forward(x, w1, b1, w2, b2):
    x_temp = x @ w1.T + b1
    x1 = (1.0 + jnp.clip(2.0 * x_temp - 1.0, -1.0, 1.0)) * 0.5
    x_1_temp = x1 @ w2.T + b2
    x2 = jax.nn.softmax(x_1_temp, axis=-1)
    return x2, x1, x_temp, x_1_temp


# TODO(synk): Actor.act() (host-side np.random.choice sampling +
# torch.cuda.empty_cache()) is host logic, not a kernel op — not translated.


if __name__ == "__main__":
    # Small shapes consistent with the module (act() samples from 3 actions).
    batch = 2
    input_size = 16
    hidden_size = 32
    output_size = 3

    key = jax.random.PRNGKey(0)
    kx, k1, k2, k3, k4 = jax.random.split(key, 5)

    x = jax.random.normal(kx, (batch, input_size), dtype=jnp.float32)

    # Deterministic PyTorch-Linear-style init: U(-1/sqrt(fan_in), 1/sqrt(fan_in))
    bound1 = 1.0 / (input_size ** 0.5)
    w1 = jax.random.uniform(k1, (hidden_size, input_size), jnp.float32, -bound1, bound1)
    b1 = jax.random.uniform(k2, (hidden_size,), jnp.float32, -bound1, bound1)
    bound2 = 1.0 / (hidden_size ** 0.5)
    w2 = jax.random.uniform(k3, (output_size, hidden_size), jnp.float32, -bound2, bound2)
    b2 = jax.random.uniform(k4, (output_size,), jnp.float32, -bound2, bound2)

    # One-time parameter packing (amortized across all forward calls).
    p1, p2 = prepare_actor_params(w1, b1, w2, b2)

    outs = actor_forward(x, p1, p2)
    outs = jax.block_until_ready(outs)

    refs = reference_forward(x, w1, b1, w2, b2)

    x2, x1, x_temp, x_1_temp = outs
    r2, r1, r_temp, r_1_temp = refs

    # x2 uses approx reciprocal (EUP vrcp) -> ~1e-3 relative error is expected.
    assert x2.shape == r2.shape
    assert jnp.allclose(x2, r2, atol=5e-3, rtol=5e-3), (x2, r2)
    for got, want in ((x1, r1), (x_temp, r_temp), (x_1_temp, r_1_temp)):
        assert got.shape == want.shape
        assert jnp.allclose(got, want, atol=1e-5, rtol=1e-5), (got, want)

    print("KERNEL_OK")
</pallas_src>

<mosaic_0001>
module attributes {stable_mosaic.version = 11 : i64} {
  func.func @actor_kernel(%arg0: i32, %arg1: memref<2x16xf32, #tpu.memory_space<vmem>>, %arg2: memref<17x32xf32, #tpu.memory_space<vmem>>, %arg3: memref<33x3xf32, #tpu.memory_space<vmem>>, %arg4: memref<2x128xf32, #tpu.memory_space<vmem>>) attributes {dimension_semantics = [#tpu.dimension_semantics<parallel>], iteration_bounds = array<i64: 1>, scalar_prefetch = 0 : i64, scratch_operands = 0 : i64, tpu.core_type = #tpu.core_type<tc>, window_params = [{transform_indices = @transform_0, window_bounds = array<i64: 2, 16>}, {pipeline_mode = #tpu.pipeline_mode<synchronous>, transform_indices = @transform_1, window_bounds = array<i64: 17, 32>}, {pipeline_mode = #tpu.pipeline_mode<synchronous>, transform_indices = @transform_2, window_bounds = array<i64: 33, 3>}, {transform_indices = @transform_3, window_bounds = array<i64: 2, 128>}]} {
    %c0 = arith.constant 0 : index
    %c0_0 = arith.constant 0 : index
    %0 = vector.load %arg1[%c0, %c0_0] : memref<2x16xf32, #tpu.memory_space<vmem>>, vector<2x16xf32>
    %c0_1 = arith.constant 0 : index
    %c0_2 = arith.constant 0 : index
    %1 = vector.load %arg2[%c0_1, %c0_2] : memref<17x32xf32, #tpu.memory_space<vmem>>, vector<17x32xf32>
    %c0_3 = arith.constant 0 : index
    %c0_4 = arith.constant 0 : index
    %2 = vector.load %arg3[%c0_3, %c0_4] : memref<33x3xf32, #tpu.memory_space<vmem>>, vector<33x3xf32>
    %3 = vector.extract_strided_slice %1 {offsets = [0, 0], sizes = [16, 32], strides = [1, 1]} : vector<17x32xf32> to vector<16x32xf32>
    %4 = vector.extract_strided_slice %1 {offsets = [16, 0], sizes = [1, 32], strides = [1, 1]} : vector<17x32xf32> to vector<1x32xf32>
    %cst = arith.constant dense<0.000000e+00> : vector<2x32xf32>
    %5 = tpu.matmul %0, %3, %cst {dimension_numbers = #tpu.dot_dimension_numbers<[1], [0], [0], [1], [0, 0, 1, 1], [], []>} : vector<2x16xf32>, vector<16x32xf32>, vector<2x32xf32> -> vector<2x32xf32>
    %6 = vector.broadcast %4 : vector<1x32xf32> to vector<2x32xf32>
    %7 = arith.addf %5, %6 : vector<2x32xf32>
    %cst_5 = arith.constant 2.000000e+00 : f32
    %8 = vector.broadcast %cst_5 : f32 to vector<2x32xf32>
    %9 = arith.mulf %8, %7 : vector<2x32xf32>
    %cst_6 = arith.constant 1.000000e+00 : f32
    %10 = vector.broadcast %cst_6 : f32 to vector<2x32xf32>
    %11 = arith.subf %9, %10 : vector<2x32xf32>
    %cst_7 = arith.constant -1.000000e+00 : f32
    %cst_8 = arith.constant 1.000000e+00 : f32
    %12 = vector.broadcast %cst_7 : f32 to vector<2x32xf32>
    %13 = arith.maximumf %12, %11 : vector<2x32xf32>
    %14 = vector.broadcast %cst_8 : f32 to vector<2x32xf32>
    %15 = arith.minimumf %14, %13 : vector<2x32xf32>
    %cst_9 = arith.constant 1.000000e+00 : f32
    %16 = vector.broadcast %cst_9 : f32 to vector<2x32xf32>
    %17 = arith.addf %16, %15 : vector<2x32xf32>
    %cst_10 = arith.constant 5.000000e-01 : f32
    %18 = vector.broadcast %cst_10 : f32 to vector<2x32xf32>
    %19 = arith.mulf %17, %18 : vector<2x32xf32>
    %20 = vector.extract_strided_slice %2 {offsets = [0, 0], sizes = [32, 3], strides = [1, 1]} : vector<33x3xf32> to vector<32x3xf32>
    %21 = vector.extract_strided_slice %2 {offsets = [32, 0], sizes = [1, 3], strides = [1, 1]} : vector<33x3xf32> to vector<1x3xf32>
    %cst_11 = arith.constant dense<0.000000e+00> : vector<2x3xf32>
    %22 = tpu.matmul %19, %20, %cst_11 {dimension_numbers = #tpu.dot_dimension_numbers<[1], [0], [0], [1], [0, 0, 1, 1], [], []>} : vector<2x32xf32>, vector<32x3xf32>, vector<2x3xf32> -> vector<2x3xf32>
    %23 = vector.broadcast %21 : vector<1x3xf32> to vector<2x3xf32>
    %24 = arith.addf %22, %23 : vector<2x3xf32>
    %cst_12 = arith.constant dense<0xFF800000> : vector<2xf32>
    %25 = vector.multi_reduction <maximumf>, %24, %cst_12 [1] : vector<2x3xf32> to vector<2xf32>
    %26 = vector.shape_cast %25 : vector<2xf32> to vector<2x1xf32>
    %27 = vector.broadcast %26 : vector<2x1xf32> to vector<2x3xf32>
    %28 = arith.subf %24, %27 : vector<2x3xf32>
    %29 = math.exp %28 : vector<2x3xf32>
    %cst_13 = arith.constant dense<0.000000e+00> : vector<2xf32>
    %30 = vector.multi_reduction <add>, %29, %cst_13 [1] : vector<2x3xf32> to vector<2xf32>
    %31 = vector.shape_cast %30 : vector<2xf32> to vector<2x1xf32>
    %32 = tpu.reciprocal %31 {approx = true} : vector<2x1xf32> -> vector<2x1xf32>
    %33 = vector.broadcast %32 : vector<2x1xf32> to vector<2x3xf32>
    %34 = arith.mulf %29, %33 : vector<2x3xf32>
    %cst_14 = arith.constant 0.000000e+00 : f32
    %35 = vector.broadcast %cst_14 : f32 to vector<2x58xf32>
    %36 = tpu.concatenate %34, %19, %7, %24, %35 in 1 : vector<2x3xf32>, vector<2x32xf32>, vector<2x32xf32>, vector<2x3xf32>, vector<2x58xf32> -> vector<2x128xf32>
    %c0_15 = arith.constant 0 : index
    %c0_16 = arith.constant 0 : index
    %37 = vector.load %arg4[%c0_15, %c0_16] : memref<2x128xf32, #tpu.memory_space<vmem>>, vector<2x128xf32>
    tpu.vector_store %arg4[%c0_15, %c0_16], %36 {strides = array<i32>} : memref<2x128xf32, #tpu.memory_space<vmem>>, vector<2x128xf32>,
    return
  }
  func.func @transform_0(%arg0: i32) -> (i32, i32) {
    %c0_i32 = arith.constant 0 : i32
    %c0_i32_0 = arith.constant 0 : i32
    return %arg0, %c0_i32 : i32, i32
  }
  func.func @transform_1(%arg0: i32) -> (i32, i32) {
    %c0_i32 = arith.constant 0 : i32
    %c0_i32_0 = arith.constant 0 : i32
    %c0_i32_1 = arith.constant 0 : i32
    return %c0_i32, %c0_i32_0 : i32, i32
  }
  func.func @transform_2(%arg0: i32) -> (i32, i32) {
    %c0_i32 = arith.constant 0 : i32
    %c0_i32_0 = arith.constant 0 : i32
    %c0_i32_1 = arith.constant 0 : i32
    return %c0_i32, %c0_i32_0 : i32, i32
  }
  func.func @transform_3(%arg0: i32) -> (i32, i32) {
    %c0_i32 = arith.constant 0 : i32
    %c0_i32_0 = arith.constant 0 : i32
    return %arg0, %c0_i32 : i32, i32
  }
}

</mosaic_0001>

<llo_original>
// kernel: actor_forward.1
$region0: #{actor_forward.1}
  #allocation0 [shape = 'u32[]', space=smem, size = 0x4, offset = 0x4, fixed_abs, tag = 'smem constant byte address 0x4 - core index']
  #allocation1 [shape = 'u32[144,128]{1,0:T(1,128)}', space=vmem, size = 0x12000, scoped, tag = 'internal scratch']
  %s0 = inlined_call_operand.vmem [shape: f32[2,16], index: 0, kind: input, shape index: {}]
  %s1 = inlined_call_operand.vmem [shape: f32[17,32], index: 1, kind: input, shape index: {}]
  %s2 = inlined_call_operand.vmem [shape: f32[33,3], index: 2, kind: input, shape index: {}]
  %s3 = inlined_call_operand.vmem [shape: f32[2,128], index: 3, kind: output, shape index: {}]
  %s4 = sld [smem:[#allocation0]]
  $region22: #{actor_forward.1} parent=0
    _
  %s6 = ssub.s32 1, %s4
  %s7 = scalar_select 0, %s6, %s4
  // Predicated region
  $region2: #{actor_forward.1} parent=0 // pred_check
    _
  $region3: #{actor_forward.1} parent=0 // pred_check_branch
    %9 = sbr.rel (0) target = $region5
  $region4: #{actor_forward.1} parent=0 // pred_region
    _
  $region5: #{actor_forward.1} parent=0 // pred_fallthru
    _
  // Predicated region
  $region6: #{actor_forward.1} parent=0 // pred_check
    _
  $region7: #{actor_forward.1} parent=0 // pred_check_branch
    %11 = sbr.rel (0) target = $region9
  $region8: #{actor_forward.1} parent=0 // pred_region
    _
  $region9: #{actor_forward.1} parent=0 // pred_fallthru
    _
  // Predicated region
  $region10: #{actor_forward.1} parent=0 // pred_check
    _
  $region11: #{actor_forward.1} parent=0 // pred_check_branch
    %13 = sbr.rel (0) target = $region13
  $region12: #{actor_forward.1} parent=0 // pred_region
    _
  $region13: #{actor_forward.1} parent=0 // pred_fallthru
    _
  %v14 = vld [vmem:[%s0] sm:$0x3]
  %v15 = vld [vmem:[%s1] sm:$0xff]
  %v16 = vld [vmem:[%s1 + $0x8] sm:$0xff]
  %v17 = vld [vmem:[%s1 + $0x10] sm:$0x1]
  %v18 = vld [vmem:[%s2] sm:$0xff]
  %v19 = vld [vmem:[%s2 + $0x8] sm:$0xff]
  %v20 = vld [vmem:[%s2 + $0x10] sm:$0xff]
  %v21 = vld [vmem:[%s2 + $0x18] sm:$0xff]
  %v22 = vld [vmem:[%s2 + $0x20] sm:$0x1]
  %v23 = vlaneseq
  %v24 = vshrl.u32 %v23, 7
  %v25 = vsub.s32 0, %v24
  %v26 = vrot.slane %v17, %v25
  %vm27 = vcmask 130048
  %v29 = vsel %vm27, %v14, 0
  %31 = vmatprep.subr.mxu0 0.0
  %32 = vmatpush1.msra.mxu0 0.0
  %33 = vmatprep.subr.mxu0 0.0
  %34 = vmatpush1.msra.mxu0 0.0
  %35 = vmatprep.subr.mxu0 0.0
  %36 = vmatpush1.msra.mxu0 0.0
  %37 = vmatprep.subr.mxu0 0.0
  %38 = vmatpush1.msra.mxu0 0.0
  %39 = vmatprep.subr.mxu0 0.0
  %40 = vmatpush1.msra.mxu0 0.0
  %41 = vmatprep.subr.mxu0 0.0
  %42 = vmatpush1.msra.mxu0 0.0
  %43 = vmatprep.subr.mxu0 0.0
  %44 = vmatpush1.msra.mxu0 0.0
  %45 = vmatprep.subr.mxu0 0.0
  %46 = vmatpush1.msra.mxu0 0.0
  %47 = vmatprep.subr.mxu0 0.0
  %48 = vmatpush1.msra.mxu0 0.0
  %49 = vmatprep.subr.mxu0 0.0
  %50 = vmatpush1.msra.mxu0 0.0
  %51 = vmatprep.subr.mxu0 0.0
  %52 = vmatpush1.msra.mxu0 0.0
  %53 = vmatprep.subr.mxu0 0.0
  %54 = vmatpush1.msra.mxu0 0.0
  %55 = vmatprep.subr.mxu0 0.0
  %56 = vmatpush1.msra.mxu0 0.0
  %57 = vmatprep.subr.mxu0 0.0
  %58 = vmatpush1.msra.mxu0 0.0
  %59 = vmatprep.subr.mxu0 0.0
  %60 = vmatpush1.msra.mxu0 %v16
  %61 = vmatprep.subr.mxu0 0.0
  %62 = vmatpush1.msra.mxu0 %v15
  %63 = vmatprep.subr.mxu0 0.0
  %64 = vmatpush2.msra.mxu0 0.0
  %65 = vmatprep.subr.mxu0 0.0
  %66 = vmatpush2.msra.mxu0 0.0
  %67 = vmatprep.subr.mxu0 0.0
  %68 = vmatpush2.msra.mxu0 0.0
  %69 = vmatprep.subr.mxu0 0.0
  %70 = vmatpush2.msra.mxu0 0.0
  %71 = vmatprep.subr.mxu0 0.0
  %72 = vmatpush2.msra.mxu0 0.0
  %73 = vmatprep.subr.mxu0 0.0
  %74 = vmatpush2.msra.mxu0 0.0
  %75 = vmatprep.subr.mxu0 0.0
  %76 = vmatpush2.msra.mxu0 0.0
  %77 = vmatprep.subr.mxu0 0.0
  %78 = vmatpush2.msra.mxu0 0.0
  %79 = vmatprep.subr.mxu0 0.0
  %80 = vmatpush2.msra.mxu0 0.0
  %81 = vmatprep.subr.mxu0 0.0
  %82 = vmatpush2.msra.mxu0 0.0
  %83 = vmatprep.subr.mxu0 0.0
  %84 = vmatpush2.msra.mxu0 0.0
  %85 = vmatprep.subr.mxu0 0.0
  %86 = vmatpush2.msra.mxu0 0.0
  %87 = vmatprep.subr.mxu0 0.0
  %88 = vmatpush2.msra.mxu0 0.0
  %89 = vmatprep.subr.mxu0 0.0
  %90 = vmatpush2.msra.mxu0 0.0
  %91 = vmatprep.subr.mxu0 0.0
  %92 = vmatpush2.msra.mxu0 0.0
  %93 = vmatprep.subr.mxu0 0.0
  %94 = vmatpush2.msra.mxu0 0.0
  %95 = vmatprep.mubr.f32.mxu0 0.0
  %96 = vmatmul.mubr.f32.gmra.mxu0 %v29
  %v97 = vpop.f32.mrf.mxu0
  %v98 = vadd.f32 %v26, %v97
  %v99 = vpop.f32.mrf.mxu0
  %100 = vdwg.mxu0
  %v101 = vmul.f32 %v98, 2.0
  %v102 = vsub.f32 %v101, 1.0
  %v103 = vmax.f32 %v102, -1.0
  %v104 = vmin.f32 %v103, 1.0
  %v105 = vadd.f32 %v104, 1.0
  %v106 = vmul.f32 %v105, 0.5
  %v107 = vlaneseq
  %v108 = vshrl.u32 %v107, 7
  %v109 = vsub.s32 0, %v108
  %v110 = vrot.slane %v22, %v109
  %vm111 = vcmask 261120
  %v113 = vsel %vm111, %v106, 0
  %115 = vmatprep.subr.mxu0 0.0
  %116 = vmatpush1.msra.mxu0 0.0
  %117 = vmatprep.subr.mxu0 0.0
  %118 = vmatpush1.msra.mxu0 0.0
  %119 = vmatprep.subr.mxu0 0.0
  %120 = vmatpush1.msra.mxu0 0.0
  %121 = vmatprep.subr.mxu0 0.0
  %122 = vmatpush1.msra.mxu0 0.0
  %123 = vmatprep.subr.mxu0 0.0
  %124 = vmatpush1.msra.mxu0 0.0
  %125 = vmatprep.subr.mxu0 0.0
  %126 = vmatpush1.msra.mxu0 0.0
  %127 = vmatprep.subr.mxu0 0.0
  %128 = vmatpush1.msra.mxu0 0.0
  %129 = vmatprep.subr.mxu0 0.0
  %130 = vmatpush1.msra.mxu0 0.0
  %131 = vmatprep.subr.mxu0 0.0
  %132 = vmatpush1.msra.mxu0 0.0
  %133 = vmatprep.subr.mxu0 0.0
  %134 = vmatpush1.msra.mxu0 0.0
  %135 = vmatprep.subr.mxu0 0.0
  %136 = vmatpush1.msra.mxu0 0.0
  %137 = vmatprep.subr.mxu0 0.0
  %138 = vmatpush1.msra.mxu0 0.0
  %139 = vmatprep.subr.mxu0 0.0
  %140 = vmatpush1.msra.mxu0 %v21
  %141 = vmatprep.subr.mxu0 0.0
  %142 = vmatpush1.msra.mxu0 %v20
  %143 = vmatprep.subr.mxu0 0.0
  %144 = vmatpush1.msra.mxu0 %v19
  %145 = vmatprep.subr.mxu0 0.0
  %146 = vmatpush1.msra.mxu0 %v18
  %147 = vmatprep.subr.mxu0 0.0
  %148 = vmatpush2.msra.mxu0 0.0
  %149 = vmatprep.subr.mxu0 0.0
  %150 = vmatpush2.msra.mxu0 0.0
  %151 = vmatprep.subr.mxu0 0.0
  %152 = vmatpush2.msra.mxu0 0.0
  %153 = vmatprep.subr.mxu0 0.0
  %154 = vmatpush2.msra.mxu0 0.0
  %155 = vmatprep.subr.mxu0 0.0
  %156 = vmatpush2.msra.mxu0 0.0
  %157 = vmatprep.subr.mxu0 0.0
  %158 = vmatpush2.msra.mxu0 0.0
  %159 = vmatprep.subr.mxu0 0.0
  %160 = vmatpush2.msra.mxu0 0.0
  %161 = vmatprep.subr.mxu0 0.0
  %162 = vmatpush2.msra.mxu0 0.0
  %163 = vmatprep.subr.mxu0 0.0
  %164 = vmatpush2.msra.mxu0 0.0
  %165 = vmatprep.subr.mxu0 0.0
  %166 = vmatpush2.msra.mxu0 0.0
  %167 = vmatprep.subr.mxu0 0.0
  %168 = vmatpush2.msra.mxu0 0.0
  %169 = vmatprep.subr.mxu0 0.0
  %170 = vmatpush2.msra.mxu0 0.0
  %171 = vmatprep.subr.mxu0 0.0
  %172 = vmatpush2.msra.mxu0 0.0
  %173 = vmatprep.subr.mxu0 0.0
  %174 = vmatpush2.msra.mxu0 0.0
  %175 = vmatprep.subr.mxu0 0.0
  %176 = vmatpush2.msra.mxu0 0.0
  %177 = vmatprep.subr.mxu0 0.0
  %178 = vmatpush2.msra.mxu0 0.0
  %179 = vmatprep.mubr.f32.mxu0 0.0
  %180 = vmatmul.mubr.f32.gmra.mxu0 %v113
  %v181 = vpop.f32.mrf.mxu0
  %v182 = vadd.f32 %v110, %v181
  %v183 = vpop.f32.mrf.mxu0
  %184 = vdwg.mxu0
  %vm185 = vcmask 17408
  %v186 = vsel %vm185, %v182, -inf
  %187 = vmax.xlane.f32.xlu0 %v186
  %v188 = vpop.xlane.xlu0 %187
  %v189 = vsub.f32 %v182, %v188
  %v190 = vmul.f32 %v189, 1.442695
  %v191 = vpow.pop %v190
  %v192 = vsel %vm185, %v191, 0.0
  %193 = vadd.xlane.f32.xlu0 %v192
  %v194 = vpop.xlane.xlu0 %193
  %v195 = vrcp.pop %v194
  %v196 = vmul.f32 %v191, %v195
  %197 = vrot.lane.b32.xlu0 %v106, 3
  %v198 = vpop.permute.xlu0 %197
  %201 = vrot.lane.b32.xlu0 %v98, 35
  %v202 = vpop.permute.xlu0 %201
  %205 = vrot.lane.b32.xlu0 %v182, 67
  %v206 = vpop.permute.xlu0 %205
  %vm208 = vcmask 23552
  %v209 = vsel %vm208, %v196, %v198
  %vm210 = vcmask 285696
  %v211 = vsel %vm210, %v209, %v202
  %vm212 = vcmask 547840
  %v213 = vsel %vm212, %v211, %v206
  %vm214 = vcmask 572416
  %v215 = vsel %vm214, %v213, 0.0
  %216 = vst [vmem:[%s3] sm:$0x3] %v215
  // Predicated region
  $region14: #{actor_forward.1} parent=0 // pred_check
    _
  $region15: #{actor_forward.1} parent=0 // pred_check_branch
    %218 = sbr.rel (0) target = $region17
  $region16: #{actor_forward.1} parent=0 // pred_region
    _
  $region17: #{actor_forward.1} parent=0 // pred_fallthru
    _
  // Predicated region
  $region18: #{actor_forward.1} parent=0 // pred_check
    _
  $region19: #{actor_forward.1} parent=0 // pred_check_branch
    %220 = sbr.rel (0) target = $region21
  $region20: #{actor_forward.1} parent=0 // pred_region
    _
  $region21: #{actor_forward.1} parent=0 // pred_fallthru
    _

</llo_original>
